<compile_context>
chip_gen: v7x
topology: tpu7x:2x2x1
jax: 0.10.0
libtpu: 0.0.40
codegen_flags: <defaults>
</compile_context>

<pallas_src>
import functools
import math

import jax
import jax.numpy as jnp
from jax.experimental import pallas as pl
from jax.experimental.pallas import tpu as pltpu

# ---- module constants (from the PyTorch file) -------------------------------
ACT_DIM = 64          # act_dim
FIN_EMB = 64          # fin_emb (LSTM hidden)
IMG_DIM = 128         # img_dim (image embedding fed to hid2)
OUT_DIM = 11          # fc_out output
ACTION_IN = 4         # hid1 input features
BN_EPS = 1e-5

# ---- synthetic "resnet" stem config ------------------------------------------
STEM_C = 32
KH = KW = 3
PATCH_F = 32          # 3*3*3 = 27 im2col features, zero-padded to 32
OUT_PAD = 64          # fc_out's 11 outputs zero-padded to 64 lanes

# ---- packed bf16 weight-slab row layout (width 256) --------------------------
R_CONV = 0            # [  0: 32] conv weight (27 valid rows),   lanes 0:32
R_HID2 = 32           # [ 32:128] fused hid2 W for (pooled|act), lanes 0:128
R_LSTM = 128          # [128:320] LSTM (W_ih|W_hh) for (x|h0),   lanes 0:256
R_HID1 = 320          # [320:384] hid1 weight (4 valid rows),    lanes 0:64
R_FCOUT = 384         # [384:448] fc_out weight (11 valid lanes of 0:64)
W_ROWS = 448

# ---- f32 vecs-slab row layout (8, 256) ---------------------------------------
V_CONVB, V_H1B, V_H2B, V_BNG, V_BNB, V_LSTMB, V_FOB = range(7)


def _model_kernel(patches_ref, wts_ref, vecs_ref, state_ref, out_ref, *, batch, hw):
    f32 = jnp.float32
    bf16 = jnp.bfloat16

    # --- synthetic ResNet stem: conv (bf16 MXU operands, f32 acc) + ReLU ------
    conv = jnp.dot(patches_ref[...], wts_ref[R_CONV:R_CONV + PATCH_F, 0:STEM_C],
                   preferred_element_type=f32)
    conv = jnp.maximum(conv + vecs_ref[V_CONVB:V_CONVB + 1, 0:STEM_C], 0.0)

    # global average pool: one sublane reduction per batch via reshape + mean
    pooled = jnp.mean(conv.reshape(batch, hw, STEM_C), axis=1)        # (B, 32)

    # --- actionLSTM.forward (dropout = identity in eval) ----------------------
    act64 = state_ref[:, 0:ACT_DIM]                      # actions zero-padded to 64
    h0v = state_ref[:, ACT_DIM:ACT_DIM + FIN_EMB]
    c0v = state_ref[:, ACT_DIM + FIN_EMB:ACT_DIM + 2 * FIN_EMB]

    # act_emb = relu(hid1(action)); padded lanes contribute 0 (zero weight rows)
    act_emb = jnp.maximum(
        jnp.dot(act64.astype(bf16), wts_ref[R_HID1:R_HID1 + ACT_DIM, 0:ACT_DIM],
                preferred_element_type=f32)
        + vecs_ref[V_H1B:V_H1B + 1, 0:ACT_DIM], 0.0)                  # (B, 64)

    # hid2 (stem FC folded in, image/action halves merged): ONE K=96 dot.
    cat_ia = jnp.concatenate([pooled, act_emb], axis=1).astype(bf16)  # (B, 96)
    pre = (jnp.dot(cat_ia, wts_ref[R_HID2:R_HID2 + 96, 0:IMG_DIM],
                   preferred_element_type=f32)
           + vecs_ref[V_H2B:V_H2B + 1, 0:IMG_DIM])                    # (B, 128)

    # BatchNorm1d(128, track_running_stats=False): batch mean / biased var (f32)
    mu = jnp.mean(pre, axis=0, keepdims=True)
    var = jnp.mean((pre - mu) ** 2, axis=0, keepdims=True)
    xn = (pre - mu) * jax.lax.rsqrt(var + BN_EPS)
    x = jnp.maximum(xn * vecs_ref[V_BNG:V_BNG + 1, 0:IMG_DIM]
                    + vecs_ref[V_BNB:V_BNB + 1, 0:IMG_DIM], 0.0)      # relu(batch1(.))

    # LSTMCell(128, fin_emb): fused gates -> ONE merged K=192 MXU dot on (x|h0)
    xh = jnp.concatenate([x, h0v], axis=1).astype(bf16)               # (B, 192)
    pre_g = (jnp.dot(xh, wts_ref[R_LSTM:R_LSTM + IMG_DIM + FIN_EMB, :],
                     preferred_element_type=f32)
             + vecs_ref[V_LSTMB:V_LSTMB + 1, :])                      # (B, 256)

    gi = jax.nn.sigmoid(pre_g[:, 0:FIN_EMB])          # PyTorch gate order i, f, g, o
    gf = jax.nn.sigmoid(pre_g[:, FIN_EMB:2 * FIN_EMB])
    gg = jnp.tanh(pre_g[:, 2 * FIN_EMB:3 * FIN_EMB])
    go = jax.nn.sigmoid(pre_g[:, 3 * FIN_EMB:4 * FIN_EMB])

    cx = gf * c0v + gi * gg
    hx = go * jnp.tanh(cx)

    # output = fc_out(hx) (padded to 64 lanes); single lane-dense (B,128) store
    out64 = (jnp.dot(hx.astype(bf16), wts_ref[R_FCOUT:R_FCOUT + FIN_EMB, 0:OUT_PAD],
                     preferred_element_type=f32)
             + vecs_ref[V_FOB:V_FOB + 1, 0:OUT_PAD])
    out_ref[...] = jnp.concatenate([out64, cx], axis=1)


# ---- parameter init (deterministic, mirrors initialise_weights) -------------
def _xavier_t(key, out_dim, in_dim):
    """torch.nn.init.xavier_uniform_ on a (out, in) weight, returned as (in, out)."""
    limit = math.sqrt(6.0 / (in_dim + out_dim))
    w = jax.random.uniform(key, (out_dim, in_dim), jnp.float32, -limit, limit)
    return jnp.transpose(w)


def init_params(key):
    ks = jax.random.split(key, 8)
    p = {}

    # synthetic stem (stands in for the unavailable pretrained ResNet-50)
    fan_in = KH * KW * 3
    p["conv_w"] = (jax.random.normal(ks[0], (fan_in, STEM_C), jnp.float32)
                   * math.sqrt(2.0 / fan_in))
    p["conv_b"] = jnp.zeros((STEM_C,), jnp.float32)
    p["stem_w"] = _xavier_t(ks[1], IMG_DIM, STEM_C)                  # (32, 128)
    p["stem_b"] = jnp.zeros((IMG_DIM,), jnp.float32)

    # hid1: Linear(4, act_dim)
    p["h1w"] = _xavier_t(ks[2], ACT_DIM, ACTION_IN)                  # (4, 64)
    p["h1b"] = jnp.zeros((ACT_DIM,), jnp.float32)

    # hid2: Linear(act_dim + img_dim, 128); cat order is (image, act_emb)
    w2 = _xavier_t(ks[3], 128, ACT_DIM + IMG_DIM)                    # (192, 128)
    p["h2wi"] = w2[:IMG_DIM, :]                                      # (128, 128)
    p["h2wa"] = w2[IMG_DIM:, :]                                      # (64, 128)
    p["h2b"] = jnp.zeros((IMG_DIM,), jnp.float32)

    # batch1: BatchNorm1d(128) affine params
    p["bn_g"] = jnp.ones((IMG_DIM,), jnp.float32)
    p["bn_b"] = jnp.zeros((IMG_DIM,), jnp.float32)

    # lstm1: LSTMCell(128, fin_emb); fused weights kept in PyTorch i|f|g|o layout
    p["wih"] = _xavier_t(ks[4], 4 * FIN_EMB, IMG_DIM)                # (128, 256)
    p["whh"] = _xavier_t(ks[5], 4 * FIN_EMB, FIN_EMB)                # (64, 256)
    # NOTE: this slot must hold the SUM b_ih + b_hh when loading a checkpoint.
    p["b_gates"] = jnp.zeros((4 * FIN_EMB,), jnp.float32)

    # fc_out: Linear(fin_emb, 11)
    p["fow"] = _xavier_t(ks[6], OUT_DIM, FIN_EMB)                    # (64, 11)
    p["fob"] = jnp.zeros((OUT_DIM,), jnp.float32)
    return p


def pack_params(p):
    """Pack all tensors into ONE bf16 weight slab + ONE f32 vecs slab (2 DMAs)."""
    # Fold the stem FC into hid2's image half (exact: no nonlinearity between
    # the synthetic stem FC and hid2).  Computed in f32 before the bf16 cast.
    w_fold = p["stem_w"] @ p["h2wi"]                                 # (32, 128)
    h2b_fold = p["h2b"] + p["stem_b"] @ p["h2wi"]                    # (128,)

    wts = jnp.zeros((W_ROWS, 256), jnp.float32)
    wts = wts.at[R_CONV:R_CONV + KH * KW * 3, 0:STEM_C].set(p["conv_w"])
    wts = wts.at[R_HID2:R_HID2 + STEM_C, 0:IMG_DIM].set(w_fold)
    wts = wts.at[R_HID2 + STEM_C:R_HID2 + 96, 0:IMG_DIM].set(p["h2wa"])
    wts = wts.at[R_LSTM:R_LSTM + IMG_DIM, :].set(p["wih"])
    wts = wts.at[R_LSTM + IMG_DIM:R_LSTM + IMG_DIM + FIN_EMB, :].set(p["whh"])
    wts = wts.at[R_HID1:R_HID1 + ACTION_IN, 0:ACT_DIM].set(p["h1w"])
    wts = wts.at[R_FCOUT:R_FCOUT + FIN_EMB, 0:OUT_DIM].set(p["fow"])
    wts_bf16 = wts.astype(jnp.bfloat16)

    vecs = jnp.zeros((8, 256), jnp.float32)
    vecs = vecs.at[V_CONVB, 0:STEM_C].set(p["conv_b"])
    vecs = vecs.at[V_H1B, 0:ACT_DIM].set(p["h1b"])
    vecs = vecs.at[V_H2B, 0:IMG_DIM].set(h2b_fold)
    vecs = vecs.at[V_BNG, 0:IMG_DIM].set(p["bn_g"])
    vecs = vecs.at[V_BNB, 0:IMG_DIM].set(p["bn_b"])
    vecs = vecs.at[V_LSTMB, :].set(p["b_gates"])                     # b_ih + b_hh
    vecs = vecs.at[V_FOB, 0:OUT_DIM].set(p["fob"])
    return wts_bf16, vecs


# ---- glue: layout conversion + im2col + pallas_call (fully jitted) -----------
def _im2col_nchw(images_nchw):
    x = jnp.transpose(images_nchw, (0, 2, 3, 1))                     # NCHW -> NHWC
    B, H, W, C = x.shape
    xp = jnp.pad(x, ((0, 0), (1, 1), (1, 1), (0, 0)))
    cols = [xp[:, i:i + H, j:j + W, :] for i in range(KH) for j in range(KW)]
    patches = jnp.stack(cols, axis=3).reshape(B * H * W, KH * KW * C)
    return jnp.pad(patches, ((0, 0), (0, PATCH_F - KH * KW * C)))    # pad 27 -> 32


@jax.jit
def video_frame_forward(images_nchw, actions, h0, c0, wts_bf16, vecs):
    B, _, H, W = images_nchw.shape
    hw = H * W
    patches = _im2col_nchw(images_nchw).astype(jnp.bfloat16)         # (B*HW, 32)

    # lane-aligned (B, 192) state slab (actions padded 4->64 | h0 | c0): 1 DMA
    state = jnp.concatenate(
        [jnp.pad(actions, ((0, 0), (0, ACT_DIM - ACTION_IN))), h0, c0], axis=1)

    vmem = pl.BlockSpec(memory_space=pltpu.MemorySpace.VMEM)
    combined = pl.pallas_call(
        functools.partial(_model_kernel, batch=B, hw=hw),
        out_shape=jax.ShapeDtypeStruct((B, OUT_PAD + FIN_EMB), jnp.float32),
        in_specs=[vmem] * 4,
        out_specs=vmem,
    )(patches, wts_bf16, vecs, state)
    # TODO(synk): if batch scales, add a batch grid axis (dimension_semantics=
    # ("parallel",)) restricted to the conv+pool stage (blocks aligned to hw-row
    # boundaries) or with a two-phase BatchNorm, since BN needs full-batch
    # statistics; also bound VMEM via CompilerParams(vmem_limit_bytes=...) for
    # v7x's 64 MiB.  Unnecessary at B=2.
    return combined[:, :OUT_DIM], combined[:, OUT_PAD:]


if __name__ == "__main__":
    key = jax.random.PRNGKey(0)
    kp, ki, ka, kh, kc = jax.random.split(key, 5)

    B, C, H, W = 2, 3, 16, 16                                        # small NCHW images
    images = jax.random.normal(ki, (B, C, H, W), jnp.float32)
    actions = jax.random.normal(ka, (B, ACTION_IN), jnp.float32)
    h0 = jax.random.normal(kh, (B, FIN_EMB), jnp.float32)
    c0 = jax.random.normal(kc, (B, FIN_EMB), jnp.float32)

    params = init_params(kp)
    wts_bf16, vecs = pack_params(params)

    logits, cx = video_frame_forward(images, actions, h0, c0, wts_bf16, vecs)
    jax.block_until_ready((logits, cx))

    assert logits.shape == (B, OUT_DIM), logits.shape
    assert cx.shape == (B, FIN_EMB), cx.shape
    assert bool(jnp.all(jnp.isfinite(logits))) and bool(jnp.all(jnp.isfinite(cx)))
    print("KERNEL_OK")
</pallas_src>

<mosaic_0001>
module attributes {stable_mosaic.version = 11 : i64} {
  func.func @_model_kernel(%arg0: memref<512x32xbf16, #tpu.memory_space<vmem>>, %arg1: memref<448x256xbf16, #tpu.memory_space<vmem>>, %arg2: memref<8x256xf32, #tpu.memory_space<vmem>>, %arg3: memref<2x192xf32, #tpu.memory_space<vmem>>, %arg4: memref<2x128xf32, #tpu.memory_space<vmem>>) attributes {dimension_semantics = [], scalar_prefetch = 0 : i64, scratch_operands = 0 : i64, tpu.core_type = #tpu.core_type<tc>} {
    %c0 = arith.constant 0 : index
    %c0_0 = arith.constant 0 : index
    %0 = vector.load %arg0[%c0, %c0_0] : memref<512x32xbf16, #tpu.memory_space<vmem>>, vector<512x32xbf16>
    %c0_1 = arith.constant 0 : index
    %c0_2 = arith.constant 0 : index
    %1 = vector.load %arg1[%c0_1, %c0_2] : memref<448x256xbf16, #tpu.memory_space<vmem>>, vector<32x32xbf16>
    %cst = arith.constant dense<0.000000e+00> : vector<512x32xf32>
    %2 = tpu.matmul %0, %1, %cst {dimension_numbers = #tpu.dot_dimension_numbers<[1], [0], [0], [1], [0, 0, 1, 1], [], []>} : vector<512x32xbf16>, vector<32x32xbf16>, vector<512x32xf32> -> vector<512x32xf32>
    %c0_3 = arith.constant 0 : index
    %c0_4 = arith.constant 0 : index
    %3 = vector.load %arg2[%c0_3, %c0_4] : memref<8x256xf32, #tpu.memory_space<vmem>>, vector<1x32xf32>
    %4 = vector.broadcast %3 : vector<1x32xf32> to vector<512x32xf32>
    %5 = arith.addf %2, %4 : vector<512x32xf32>
    %cst_5 = arith.constant 0.000000e+00 : f32
    %6 = vector.broadcast %cst_5 : f32 to vector<512x32xf32>
    %7 = arith.maximumf %5, %6 : vector<512x32xf32>
    %8 = vector.shape_cast %7 : vector<512x32xf32> to vector<2x256x32xf32>
    %cst_6 = arith.constant dense<0.000000e+00> : vector<2x32xf32>
    %9 = vector.multi_reduction <add>, %8, %cst_6 [1] : vector<2x256x32xf32> to vector<2x32xf32>
    %cst_7 = arith.constant 2.560000e+02 : f32
    %10 = vector.broadcast %cst_7 : f32 to vector<2x32xf32>
    %11 = arith.divf %9, %10 : vector<2x32xf32>
    %c0_8 = arith.constant 0 : index
    %c0_9 = arith.constant 0 : index
    %12 = vector.load %arg3[%c0_8, %c0_9] : memref<2x192xf32, #tpu.memory_space<vmem>>, vector<2x64xf32>
    %c0_10 = arith.constant 0 : index
    %c64 = arith.constant 64 : index
    %13 = vector.load %arg3[%c0_10, %c64] : memref<2x192xf32, #tpu.memory_space<vmem>>, vector<2x64xf32>
    %c0_11 = arith.constant 0 : index
    %c128 = arith.constant 128 : index
    %14 = vector.load %arg3[%c0_11, %c128] : memref<2x192xf32, #tpu.memory_space<vmem>>, vector<2x64xf32>
    %15 = arith.truncf %12 : vector<2x64xf32> to vector<2x64xbf16>
    %c320 = arith.constant 320 : index
    %c0_12 = arith.constant 0 : index
    %16 = vector.load %arg1[%c320, %c0_12] : memref<448x256xbf16, #tpu.memory_space<vmem>>, vector<64x64xbf16>
    %cst_13 = arith.constant dense<0.000000e+00> : vector<2x64xf32>
    %17 = tpu.matmul %15, %16, %cst_13 {dimension_numbers = #tpu.dot_dimension_numbers<[1], [0], [0], [1], [0, 0, 1, 1], [], []>} : vector<2x64xbf16>, vector<64x64xbf16>, vector<2x64xf32> -> vector<2x64xf32>
    %c1 = arith.constant 1 : index
    %c0_14 = arith.constant 0 : index
    %18 = vector.load %arg2[%c1, %c0_14] : memref<8x256xf32, #tpu.memory_space<vmem>>, vector<1x64xf32>
    %19 = vector.broadcast %18 : vector<1x64xf32> to vector<2x64xf32>
    %20 = arith.addf %17, %19 : vector<2x64xf32>
    %cst_15 = arith.constant 0.000000e+00 : f32
    %21 = vector.broadcast %cst_15 : f32 to vector<2x64xf32>
    %22 = arith.maximumf %20, %21 : vector<2x64xf32>
    %23 = tpu.concatenate %11, %22 in 1 : vector<2x32xf32>, vector<2x64xf32> -> vector<2x96xf32>
    %24 = arith.truncf %23 : vector<2x96xf32> to vector<2x96xbf16>
    %c32 = arith.constant 32 : index
    %c0_16 = arith.constant 0 : index
    %25 = vector.load %arg1[%c32, %c0_16] : memref<448x256xbf16, #tpu.memory_space<vmem>>, vector<96x128xbf16>
    %cst_17 = arith.constant dense<0.000000e+00> : vector<2x128xf32>
    %26 = tpu.matmul %24, %25, %cst_17 {dimension_numbers = #tpu.dot_dimension_numbers<[1], [0], [0], [1], [0, 0, 1, 1], [], []>} : vector<2x96xbf16>, vector<96x128xbf16>, vector<2x128xf32> -> vector<2x128xf32>
    %c2 = arith.constant 2 : index
    %c0_18 = arith.constant 0 : index
    %27 = vector.load %arg2[%c2, %c0_18] : memref<8x256xf32, #tpu.memory_space<vmem>>, vector<1x128xf32>
    %28 = vector.broadcast %27 : vector<1x128xf32> to vector<2x128xf32>
    %29 = arith.addf %26, %28 : vector<2x128xf32>
    %cst_19 = arith.constant dense<0.000000e+00> : vector<128xf32>
    %30 = vector.multi_reduction <add>, %29, %cst_19 [0] : vector<2x128xf32> to vector<128xf32>
    %31 = vector.shape_cast %30 : vector<128xf32> to vector<1x128xf32>
    %cst_20 = arith.constant 2.000000e+00 : f32
    %32 = vector.broadcast %cst_20 : f32 to vector<1x128xf32>
    %33 = arith.divf %31, %32 : vector<1x128xf32>
    %34 = vector.broadcast %33 : vector<1x128xf32> to vector<2x128xf32>
    %35 = arith.subf %29, %34 : vector<2x128xf32>
    %36 = arith.mulf %35, %35 : vector<2x128xf32>
    %cst_21 = arith.constant dense<0.000000e+00> : vector<128xf32>
    %37 = vector.multi_reduction <add>, %36, %cst_21 [0] : vector<2x128xf32> to vector<128xf32>
    %38 = vector.shape_cast %37 : vector<128xf32> to vector<1x128xf32>
    %cst_22 = arith.constant 2.000000e+00 : f32
    %39 = vector.broadcast %cst_22 : f32 to vector<1x128xf32>
    %40 = arith.divf %38, %39 : vector<1x128xf32>
    %41 = vector.broadcast %33 : vector<1x128xf32> to vector<2x128xf32>
    %42 = arith.subf %29, %41 : vector<2x128xf32>
    %cst_23 = arith.constant 9.99999974E-6 : f32
    %43 = vector.broadcast %cst_23 : f32 to vector<1x128xf32>
    %44 = arith.addf %40, %43 : vector<1x128xf32>
    %45 = math.rsqrt %44 : vector<1x128xf32>
    %46 = vector.broadcast %45 : vector<1x128xf32> to vector<2x128xf32>
    %47 = arith.mulf %42, %46 : vector<2x128xf32>
    %c3 = arith.constant 3 : index
    %c0_24 = arith.constant 0 : index
    %48 = vector.load %arg2[%c3, %c0_24] : memref<8x256xf32, #tpu.memory_space<vmem>>, vector<1x128xf32>
    %49 = vector.broadcast %48 : vector<1x128xf32> to vector<2x128xf32>
    %50 = arith.mulf %47, %49 : vector<2x128xf32>
    %c4 = arith.constant 4 : index
    %c0_25 = arith.constant 0 : index
    %51 = vector.load %arg2[%c4, %c0_25] : memref<8x256xf32, #tpu.memory_space<vmem>>, vector<1x128xf32>
    %52 = vector.broadcast %51 : vector<1x128xf32> to vector<2x128xf32>
    %53 = arith.addf %50, %52 : vector<2x128xf32>
    %cst_26 = arith.constant 0.000000e+00 : f32
    %54 = vector.broadcast %cst_26 : f32 to vector<2x128xf32>
    %55 = arith.maximumf %53, %54 : vector<2x128xf32>
    %56 = tpu.concatenate %55, %13 in 1 : vector<2x128xf32>, vector<2x64xf32> -> vector<2x192xf32>
    %57 = arith.truncf %56 : vector<2x192xf32> to vector<2x192xbf16>
    %c128_27 = arith.constant 128 : index
    %c0_28 = arith.constant 0 : index
    %58 = vector.load %arg1[%c128_27, %c0_28] : memref<448x256xbf16, #tpu.memory_space<vmem>>, vector<192x256xbf16>
    %cst_29 = arith.constant dense<0.000000e+00> : vector<2x256xf32>
    %59 = tpu.matmul %57, %58, %cst_29 {dimension_numbers = #tpu.dot_dimension_numbers<[1], [0], [0], [1], [0, 0, 1, 1], [], []>} : vector<2x192xbf16>, vector<192x256xbf16>, vector<2x256xf32> -> vector<2x256xf32>
    %c5 = arith.constant 5 : index
    %c0_30 = arith.constant 0 : index
    %60 = vector.load %arg2[%c5, %c0_30] : memref<8x256xf32, #tpu.memory_space<vmem>>, vector<1x256xf32>
    %61 = vector.broadcast %60 : vector<1x256xf32> to vector<2x256xf32>
    %62 = arith.addf %59, %61 : vector<2x256xf32>
    %63 = vector.extract_strided_slice %62 {offsets = [0, 0], sizes = [2, 64], strides = [1, 1]} : vector<2x256xf32> to vector<2x64xf32>
    %64 = arith.negf %63 : vector<2x64xf32>
    %65 = math.exp %64 : vector<2x64xf32>
    %cst_31 = arith.constant 1.000000e+00 : f32
    %66 = vector.broadcast %cst_31 : f32 to vector<2x64xf32>
    %67 = arith.addf %66, %65 : vector<2x64xf32>
    %68 = arith.divf %66, %67 : vector<2x64xf32>
    %69 = vector.extract_strided_slice %62 {offsets = [0, 64], sizes = [2, 64], strides = [1, 1]} : vector<2x256xf32> to vector<2x64xf32>
    %70 = arith.negf %69 : vector<2x64xf32>
    %71 = math.exp %70 : vector<2x64xf32>
    %cst_32 = arith.constant 1.000000e+00 : f32
    %72 = vector.broadcast %cst_32 : f32 to vector<2x64xf32>
    %73 = arith.addf %72, %71 : vector<2x64xf32>
    %74 = arith.divf %72, %73 : vector<2x64xf32>
    %75 = vector.extract_strided_slice %62 {offsets = [0, 128], sizes = [2, 64], strides = [1, 1]} : vector<2x256xf32> to vector<2x64xf32>
    %76 = math.tanh %75 : vector<2x64xf32>
    %77 = vector.extract_strided_slice %62 {offsets = [0, 192], sizes = [2, 64], strides = [1, 1]} : vector<2x256xf32> to vector<2x64xf32>
    %78 = arith.negf %77 : vector<2x64xf32>
    %79 = math.exp %78 : vector<2x64xf32>
    %cst_33 = arith.constant 1.000000e+00 : f32
    %80 = vector.broadcast %cst_33 : f32 to vector<2x64xf32>
    %81 = arith.addf %80, %79 : vector<2x64xf32>
    %82 = arith.divf %80, %81 : vector<2x64xf32>
    %83 = arith.mulf %74, %14 : vector<2x64xf32>
    %84 = arith.mulf %68, %76 : vector<2x64xf32>
    %85 = arith.addf %83, %84 : vector<2x64xf32>
    %86 = math.tanh %85 : vector<2x64xf32>
    %87 = arith.mulf %82, %86 : vector<2x64xf32>
    %88 = arith.truncf %87 : vector<2x64xf32> to vector<2x64xbf16>
    %c384 = arith.constant 384 : index
    %c0_34 = arith.constant 0 : index
    %89 = vector.load %arg1[%c384, %c0_34] : memref<448x256xbf16, #tpu.memory_space<vmem>>, vector<64x64xbf16>
    %cst_35 = arith.constant dense<0.000000e+00> : vector<2x64xf32>
    %90 = tpu.matmul %88, %89, %cst_35 {dimension_numbers = #tpu.dot_dimension_numbers<[1], [0], [0], [1], [0, 0, 1, 1], [], []>} : vector<2x64xbf16>, vector<64x64xbf16>, vector<2x64xf32> -> vector<2x64xf32>
    %c6 = arith.constant 6 : index
    %c0_36 = arith.constant 0 : index
    %91 = vector.load %arg2[%c6, %c0_36] : memref<8x256xf32, #tpu.memory_space<vmem>>, vector<1x64xf32>
    %92 = vector.broadcast %91 : vector<1x64xf32> to vector<2x64xf32>
    %93 = arith.addf %90, %92 : vector<2x64xf32>
    %94 = tpu.concatenate %93, %85 in 1 : vector<2x64xf32>, vector<2x64xf32> -> vector<2x128xf32>
    %c0_37 = arith.constant 0 : index
    %c0_38 = arith.constant 0 : index
    %95 = vector.load %arg4[%c0_37, %c0_38] : memref<2x128xf32, #tpu.memory_space<vmem>>, vector<2x128xf32>
    tpu.vector_store %arg4[%c0_37, %c0_38], %94 {strides = array<i32>} : memref<2x128xf32, #tpu.memory_space<vmem>>, vector<2x128xf32>,
    return
  }
}

</mosaic_0001>

<llo_original>
// kernel: video_frame_forward.1
$region0: #{video_frame_forward.1}
  #allocation0 [shape = 'u32[]', space=smem, size = 0x4, offset = 0x4, fixed_abs, tag = 'smem constant byte address 0x4 - core index']
  #allocation1 [shape = 'u32[144,128]{1,0:T(1,128)}', space=vmem, size = 0x12000, scoped, tag = 'internal scratch']
  %s0 = inlined_call_operand.vmem [shape: bf16[512,32], index: 0, kind: input, shape index: {}]
  %s1 = inlined_call_operand.vmem [shape: bf16[448,256], index: 1, kind: input, shape index: {}]
  %s2 = inlined_call_operand.vmem [shape: f32[8,256], index: 2, kind: input, shape index: {}]
  %s3 = inlined_call_operand.vmem [shape: f32[2,192], index: 3, kind: input, shape index: {}]
  %s4 = inlined_call_operand.vmem [shape: f32[2,128], index: 4, kind: output, shape index: {}]
  %s5 = sld [smem:[#allocation0]]
  $region26: #{video_frame_forward.1} parent=0
    _
  %s7 = ssub.s32 1, %s5
  %s8 = scalar_select 0, %s7, %s5
  // Predicated region
  $region2: #{video_frame_forward.1} parent=0 // pred_check
    _
  $region3: #{video_frame_forward.1} parent=0 // pred_check_branch
    %10 = sbr.rel (0) target = $region5
  $region4: #{video_frame_forward.1} parent=0 // pred_region
    _
  $region5: #{video_frame_forward.1} parent=0 // pred_fallthru
    _
  // Predicated region
  $region6: #{video_frame_forward.1} parent=0 // pred_check
    _
  $region7: #{video_frame_forward.1} parent=0 // pred_check_branch
    %12 = sbr.rel (0) target = $region9
  $region8: #{video_frame_forward.1} parent=0 // pred_region
    _
  $region9: #{video_frame_forward.1} parent=0 // pred_fallthru
    _
  // Predicated region
  $region10: #{video_frame_forward.1} parent=0 // pred_check
    _
  $region11: #{video_frame_forward.1} parent=0 // pred_check_branch
    %14 = sbr.rel (0) target = $region13
  $region12: #{video_frame_forward.1} parent=0 // pred_region
    _
  $region13: #{video_frame_forward.1} parent=0 // pred_fallthru
    _
  // Predicated region
  $region14: #{video_frame_forward.1} parent=0 // pred_check
    _
  $region15: #{video_frame_forward.1} parent=0 // pred_check_branch
    %16 = sbr.rel (0) target = $region17
  $region16: #{video_frame_forward.1} parent=0 // pred_region
    _
  $region17: #{video_frame_forward.1} parent=0 // pred_fallthru
    _
  %v18 = vld [vmem:[%s0] sm:$0xf]
  %v19 = vld [vmem:[%s0 + $0x4] sm:$0xf]
  %v20 = vld [vmem:[%s0 + $0x8] sm:$0xf]
  %v21 = vld [vmem:[%s0 + $0xc] sm:$0xf]
  %v22 = vld [vmem:[%s0 + $0x10] sm:$0xf]
  %v23 = vld [vmem:[%s0 + $0x14] sm:$0xf]
  %v24 = vld [vmem:[%s0 + $0x18] sm:$0xf]
  %v25 = vld [vmem:[%s0 + $0x1c] sm:$0xf]
  %v26 = vld [vmem:[%s0 + $0x20] sm:$0xf]
  %v27 = vld [vmem:[%s0 + $0x24] sm:$0xf]
  %v28 = vld [vmem:[%s0 + $0x28] sm:$0xf]
  %v29 = vld [vmem:[%s0 + $0x2c] sm:$0xf]
  %v30 = vld [vmem:[%s0 + $0x30] sm:$0xf]
  %v31 = vld [vmem:[%s0 + $0x34] sm:$0xf]
  %v32 = vld [vmem:[%s0 + $0x38] sm:$0xf]
  %v33 = vld [vmem:[%s0 + $0x3c] sm:$0xf]
  %v34 = vld [vmem:[%s0 + $0x40] sm:$0xf]
  %v35 = vld [vmem:[%s0 + $0x44] sm:$0xf]
  %v36 = vld [vmem:[%s0 + $0x48] sm:$0xf]
  %v37 = vld [vmem:[%s0 + $0x4c] sm:$0xf]
  %v38 = vld [vmem:[%s0 + $0x50] sm:$0xf]
  %v39 = vld [vmem:[%s0 + $0x54] sm:$0xf]
  %v40 = vld [vmem:[%s0 + $0x58] sm:$0xf]
  %v41 = vld [vmem:[%s0 + $0x5c] sm:$0xf]
  %v42 = vld [vmem:[%s0 + $0x60] sm:$0xf]
  %v43 = vld [vmem:[%s0 + $0x64] sm:$0xf]
  %v44 = vld [vmem:[%s0 + $0x68] sm:$0xf]
  %v45 = vld [vmem:[%s0 + $0x6c] sm:$0xf]
  %v46 = vld [vmem:[%s0 + $0x70] sm:$0xf]
  %v47 = vld [vmem:[%s0 + $0x74] sm:$0xf]
  %v48 = vld [vmem:[%s0 + $0x78] sm:$0xf]
  %v49 = vld [vmem:[%s0 + $0x7c] sm:$0xf]
  %v50 = vld [vmem:[%s0 + $0x80] sm:$0xf]
  %v51 = vld [vmem:[%s0 + $0x84] sm:$0xf]
  %v52 = vld [vmem:[%s0 + $0x88] sm:$0xf]
  %v53 = vld [vmem:[%s0 + $0x8c] sm:$0xf]
  %v54 = vld [vmem:[%s0 + $0x90] sm:$0xf]
  %v55 = vld [vmem:[%s0 + $0x94] sm:$0xf]
  %v56 = vld [vmem:[%s0 + $0x98] sm:$0xf]
  %v57 = vld [vmem:[%s0 + $0x9c] sm:$0xf]
  %v58 = vld [vmem:[%s0 + $0xa0] sm:$0xf]
  %v59 = vld [vmem:[%s0 + $0xa4] sm:$0xf]
  %v60 = vld [vmem:[%s0 + $0xa8] sm:$0xf]
  %v61 = vld [vmem:[%s0 + $0xac] sm:$0xf]
  %v62 = vld [vmem:[%s0 + $0xb0] sm:$0xf]
  %v63 = vld [vmem:[%s0 + $0xb4] sm:$0xf]
  %v64 = vld [vmem:[%s0 + $0xb8] sm:$0xf]
  %v65 = vld [vmem:[%s0 + $0xbc] sm:$0xf]
  %v66 = vld [vmem:[%s0 + $0xc0] sm:$0xf]
  %v67 = vld [vmem:[%s0 + $0xc4] sm:$0xf]
  %v68 = vld [vmem:[%s0 + $0xc8] sm:$0xf]
  %v69 = vld [vmem:[%s0 + $0xcc] sm:$0xf]
  %v70 = vld [vmem:[%s0 + $0xd0] sm:$0xf]
  %v71 = vld [vmem:[%s0 + $0xd4] sm:$0xf]
  %v72 = vld [vmem:[%s0 + $0xd8] sm:$0xf]
  %v73 = vld [vmem:[%s0 + $0xdc] sm:$0xf]
  %v74 = vld [vmem:[%s0 + $0xe0] sm:$0xf]
  %v75 = vld [vmem:[%s0 + $0xe4] sm:$0xf]
  %v76 = vld [vmem:[%s0 + $0xe8] sm:$0xf]
  %v77 = vld [vmem:[%s0 + $0xec] sm:$0xf]
  %v78 = vld [vmem:[%s0 + $0xf0] sm:$0xf]
  %v79 = vld [vmem:[%s0 + $0xf4] sm:$0xf]
  %v80 = vld [vmem:[%s0 + $0xf8] sm:$0xf]
  %v81 = vld [vmem:[%s0 + $0xfc] sm:$0xf]
  %v82 = vld [vmem:[%s1] sm:$0xf]
  %v83 = vld [vmem:[%s1 + $0x8] sm:$0xf]
  %v84 = vld [vmem:[%s1 + $0x10] sm:$0xf]
  %v85 = vld [vmem:[%s1 + $0x18] sm:$0xf]
  %v86 = vld [vmem:[%s2] ss:$0 sm:$0xff]
  %v151 = vunpack.c.l.b16 %v18
  %v152 = vunpack.c.l.b16 %v19
  %v153 = vunpack.c.l.b16 %v20
  %v154 = vunpack.c.l.b16 %v21
  %v155 = vunpack.c.l.b16 %v22
  %v156 = vunpack.c.l.b16 %v23
  %v157 = vunpack.c.l.b16 %v24
  %v158 = vunpack.c.l.b16 %v25
  %v159 = vunpack.c.l.b16 %v26
  %v160 = vunpack.c.l.b16 %v27
  %v161 = vunpack.c.l.b16 %v28
  %v162 = vunpack.c.l.b16 %v29
  %v163 = vunpack.c.l.b16 %v30
  %v164 = vunpack.c.l.b16 %v31
  %v165 = vunpack.c.l.b16 %v32
  %v166 = vunpack.c.l.b16 %v33
  %v167 = vunpack.c.l.b16 %v34
  %v168 = vunpack.c.l.b16 %v35
  %v169 = vunpack.c.l.b16 %v36
  %v170 = vunpack.c.l.b16 %v37
  %v171 = vunpack.c.l.b16 %v38
  %v172 = vunpack.c.l.b16 %v39
  %v173 = vunpack.c.l.b16 %v40
  %v174 = vunpack.c.l.b16 %v41
  %v175 = vunpack.c.l.b16 %v42
  %v176 = vunpack.c.l.b16 %v43
  %v177 = vunpack.c.l.b16 %v44
  %v178 = vunpack.c.l.b16 %v45
  %v179 = vunpack.c.l.b16 %v46
  %v180 = vunpack.c.l.b16 %v47
  %v181 = vunpack.c.l.b16 %v48
  %v182 = vunpack.c.l.b16 %v49
  %v183 = vunpack.c.l.b16 %v50
  %v184 = vunpack.c.l.b16 %v51
  %v185 = vunpack.c.l.b16 %v52
  %v186 = vunpack.c.l.b16 %v53
  %v187 = vunpack.c.l.b16 %v54
  %v188 = vunpack.c.l.b16 %v55
  %v189 = vunpack.c.l.b16 %v56
  %v190 = vunpack.c.l.b16 %v57
  %v191 = vunpack.c.l.b16 %v58
  %v192 = vunpack.c.l.b16 %v59
  %v193 = vunpack.c.l.b16 %v60
  %v194 = vunpack.c.l.b16 %v61
  %v195 = vunpack.c.l.b16 %v62
  %v196 = vunpack.c.l.b16 %v63
  %v197 = vunpack.c.l.b16 %v64
  %v198 = vunpack.c.l.b16 %v65
  %v199 = vunpack.c.l.b16 %v66
  %v200 = vunpack.c.l.b16 %v67
  %v201 = vunpack.c.l.b16 %v68
  %v202 = vunpack.c.l.b16 %v69
  %v203 = vunpack.c.l.b16 %v70
  %v204 = vunpack.c.l.b16 %v71
  %v205 = vunpack.c.l.b16 %v72
  %v206 = vunpack.c.l.b16 %v73
  %v207 = vunpack.c.l.b16 %v74
  %v208 = vunpack.c.l.b16 %v75
  %v209 = vunpack.c.l.b16 %v76
  %v210 = vunpack.c.l.b16 %v77
  %v211 = vunpack.c.l.b16 %v78
  %v212 = vunpack.c.l.b16 %v79
  %v213 = vunpack.c.l.b16 %v80
  %v214 = vunpack.c.l.b16 %v81
  %v215 = vpack.c.b16 %v152, %v151
  %v216 = vpack.c.b16 %v154, %v153
  %v217 = vpack.c.b16 %v156, %v155
  %v218 = vpack.c.b16 %v158, %v157
  %v219 = vpack.c.b16 %v160, %v159
  %v220 = vpack.c.b16 %v162, %v161
  %v221 = vpack.c.b16 %v164, %v163
  %v222 = vpack.c.b16 %v166, %v165
  %v223 = vpack.c.b16 %v168, %v167
  %v224 = vpack.c.b16 %v170, %v169
  %v225 = vpack.c.b16 %v172, %v171
  %v226 = vpack.c.b16 %v174, %v173
  %v227 = vpack.c.b16 %v176, %v175
  %v228 = vpack.c.b16 %v178, %v177
  %v229 = vpack.c.b16 %v180, %v179
  %v230 = vpack.c.b16 %v182, %v181
  %v231 = vpack.c.b16 %v184, %v183
  %v232 = vpack.c.b16 %v186, %v185
  %v233 = vpack.c.b16 %v188, %v187
  %v234 = vpack.c.b16 %v190, %v189
  %v235 = vpack.c.b16 %v192, %v191
  %v236 = vpack.c.b16 %v194, %v193
  %v237 = vpack.c.b16 %v196, %v195
  %v238 = vpack.c.b16 %v198, %v197
  %v239 = vpack.c.b16 %v200, %v199
  %v240 = vpack.c.b16 %v202, %v201
  %v241 = vpack.c.b16 %v204, %v203
  %v242 = vpack.c.b16 %v206, %v205
  %v243 = vpack.c.b16 %v208, %v207
  %v244 = vpack.c.b16 %v210, %v209
  %v245 = vpack.c.b16 %v212, %v211
  %v246 = vpack.c.b16 %v214, %v213
  %v251 = vunpack.c.l.b16 %v82
  %v252 = vunpack.c.l.b16 %v83
  %v253 = vunpack.c.l.b16 %v84
  %v254 = vunpack.c.l.b16 %v85
  %v255 = vpack.c.b16 %v252, %v251
  %v256 = vpack.c.b16 %v254, %v253
  %vm259 = vcmask 261120
  %v261 = vsel %vm259, %v215, 0
  %v264 = vsel %vm259, %v216, 0
  %v267 = vsel %vm259, %v217, 0
  %v270 = vsel %vm259, %v218, 0
  %v273 = vsel %vm259, %v219, 0
  %v276 = vsel %vm259, %v220, 0
  %v279 = vsel %vm259, %v221, 0
  %v282 = vsel %vm259, %v222, 0
  %v285 = vsel %vm259, %v223, 0
  %v288 = vsel %vm259, %v224, 0
  %v291 = vsel %vm259, %v225, 0
  %v294 = vsel %vm259, %v226, 0
  %v297 = vsel %vm259, %v227, 0
  %v300 = vsel %vm259, %v228, 0
  %v303 = vsel %vm259, %v229, 0
  %v306 = vsel %vm259, %v230, 0
  %v309 = vsel %vm259, %v231, 0
  %v312 = vsel %vm259, %v232, 0
  %v315 = vsel %vm259, %v233, 0
  %v318 = vsel %vm259, %v234, 0
  %v321 = vsel %vm259, %v235, 0
  %v324 = vsel %vm259, %v236, 0
  %v327 = vsel %vm259, %v237, 0
  %v330 = vsel %vm259, %v238, 0
  %v333 = vsel %vm259, %v239, 0
  %v336 = vsel %vm259, %v240, 0
  %v339 = vsel %vm259, %v241, 0
  %v342 = vsel %vm259, %v242, 0
  %v345 = vsel %vm259, %v243, 0
  %v348 = vsel %vm259, %v244, 0
  %v351 = vsel %vm259, %v245, 0
  %v354 = vsel %vm259, %v246, 0
  %356 = vmatprep.subr.bf16.mxu0 0
  %357 = vmatpush1.bf16.msra.mxu0 %v255
  %358 = vmatprep.subr.bf16.mxu0 0
  %359 = vmatpush1.bf16.msra.mxu0 %v256
  %360 = vmatprep.subr.bf16.mxu0 0
  %361 = vmatpush1.bf16.msra.mxu0 0
  %362 = vmatprep.subr.bf16.mxu0 0
  %363 = vmatpush1.bf16.msra.mxu0 0
  %364 = vmatprep.subr.bf16.mxu0 0
  %365 = vmatpush1.bf16.msra.mxu0 0
  %366 = vmatprep.subr.bf16.mxu0 0
  %367 = vmatpush1.bf16.msra.mxu0 0
  %368 = vmatprep.subr.bf16.mxu0 0
  %369 = vmatpush1.bf16.msra.mxu0 0
  %370 = vmatprep.subr.bf16.mxu0 0
  %371 = vmatpush1.bf16.msra.mxu0 0
  %372 = vmatprep.subr.bf16.mxu0 0
  %373 = vmatpush1.bf16.msra.mxu0 0
  %374 = vmatprep.subr.bf16.mxu0 0
  %375 = vmatpush1.bf16.msra.mxu0 0
  %376 = vmatprep.subr.bf16.mxu0 0
  %377 = vmatpush1.bf16.msra.mxu0 0
  %378 = vmatprep.subr.bf16.mxu0 0
  %379 = vmatpush1.bf16.msra.mxu0 0
  %380 = vmatprep.subr.bf16.mxu0 0
  %381 = vmatpush1.bf16.msra.mxu0 0
  %382 = vmatprep.subr.bf16.mxu0 0
  %383 = vmatpush1.bf16.msra.mxu0 0
  %384 = vmatprep.subr.bf16.mxu0 0
  %385 = vmatpush1.bf16.msra.mxu0 0
  %386 = vmatprep.subr.bf16.mxu0 0
  %387 = vmatpush1.bf16.msra.mxu0 0
  %388 = vmatprep.mubr.bf16.mxu0 0
  %389 = vmatmul.mubr.bf16.gmra.mrb[0].mxu0 %v261
  %v390 = vpop.f32.mrb[0].mxu0
  %v391 = vadd.f32 %v86, %v390
  %v392 = vpop.f32.mrb[0].mxu0
  %v393 = vpop.f32.mrb[0].mxu0
  %v394 = vadd.f32 %v86, %v393
  %v395 = vpop.f32.mrb[0].mxu0
  %396 = vmatprep.mubr.bf16.mxu0 0
  %397 = vmatmul.mubr.bf16.gmra.mrb[0].mxu0 %v264
  %v398 = vpop.f32.mrb[0].mxu0
  %v399 = vadd.f32 %v86, %v398
  %v400 = vpop.f32.mrb[0].mxu0
  %v401 = vpop.f32.mrb[0].mxu0
  %v402 = vadd.f32 %v86, %v401
  %v403 = vpop.f32.mrb[0].mxu0
  %404 = vmatprep.mubr.bf16.mxu0 0
  %405 = vmatmul.mubr.bf16.gmra.mrb[0].mxu0 %v267
  %v406 = vpop.f32.mrb[0].mxu0
  %v407 = vadd.f32 %v86, %v406
  %v408 = vpop.f32.mrb[0].mxu0
  %v409 = vpop.f32.mrb[0].mxu0
  %v410 = vadd.f32 %v86, %v409
  %v411 = vpop.f32.mrb[0].mxu0
  %412 = vmatprep.mubr.bf16.mxu0 0
  %413 = vmatmul.mubr.bf16.gmra.mrb[0].mxu0 %v270
  %v414 = vpop.f32.mrb[0].mxu0
  %v415 = vadd.f32 %v86, %v414
  %v416 = vpop.f32.mrb[0].mxu0
  %v417 = vpop.f32.mrb[0].mxu0
  %v418 = vadd.f32 %v86, %v417
  %v419 = vpop.f32.mrb[0].mxu0
  %420 = vmatprep.mubr.bf16.mxu0 0
  %421 = vmatmul.mubr.bf16.gmra.mrb[0].mxu0 %v273
  %v422 = vpop.f32.mrb[0].mxu0
  %v423 = vadd.f32 %v86, %v422
  %v424 = vpop.f32.mrb[0].mxu0
  %v425 = vpop.f32.mrb[0].mxu0
  %v426 = vadd.f32 %v86, %v425
  %v427 = vpop.f32.mrb[0].mxu0
  %428 = vmatprep.mubr.bf16.mxu0 0
  %429 = vmatmul.mubr.bf16.gmra.mrb[0].mxu0 %v276
  %v430 = vpop.f32.mrb[0].mxu0
  %v431 = vadd.f32 %v86, %v430
  %v432 = vpop.f32.mrb[0].mxu0
  %v433 = vpop.f32.mrb[0].mxu0
  %v434 = vadd.f32 %v86, %v433
  %v435 = vpop.f32.mrb[0].mxu0
  %436 = vmatprep.mubr.bf16.mxu0 0
  %437 = vmatmul.mubr.bf16.gmra.mrb[0].mxu0 %v279
  %v438 = vpop.f32.mrb[0].mxu0
  %v439 = vadd.f32 %v86, %v438
  %v440 = vpop.f32.mrb[0].mxu0
  %v441 = vpop.f32.mrb[0].mxu0
  %v442 = vadd.f32 %v86, %v441
  %v443 = vpop.f32.mrb[0].mxu0
  %444 = vmatprep.mubr.bf16.mxu0 0
  %445 = vmatmul.mubr.bf16.gmra.mrb[0].mxu0 %v282
  %v446 = vpop.f32.mrb[0].mxu0
  %v447 = vadd.f32 %v86, %v446
  %v448 = vpop.f32.mrb[0].mxu0
  %v449 = vpop.f32.mrb[0].mxu0
  %v450 = vadd.f32 %v86, %v449
  %v451 = vpop.f32.mrb[0].mxu0
  %452 = vmatprep.mubr.bf16.mxu0 0
  %453 = vmatmul.mubr.bf16.gmra.mrb[0].mxu0 %v285
  %v454 = vpop.f32.mrb[0].mxu0
  %v455 = vadd.f32 %v86, %v454
  %v456 = vpop.f32.mrb[0].mxu0
  %v457 = vpop.f32.mrb[0].mxu0
  %v458 = vadd.f32 %v86, %v457
  %v459 = vpop.f32.mrb[0].mxu0
  %460 = vmatprep.mubr.bf16.mxu0 0
  %461 = vmatmul.mubr.bf16.gmra.mrb[0].mxu0 %v288
  %v462 = vpop.f32.mrb[0].mxu0
  %v463 = vadd.f32 %v86, %v462
  %v464 = vpop.f32.mrb[0].mxu0
  %v465 = vpop.f32.mrb[0].mxu0
  %v466 = vadd.f32 %v86, %v465
  %v467 = vpop.f32.mrb[0].mxu0
  %468 = vmatprep.mubr.bf16.mxu0 0
  %469 = vmatmul.mubr.bf16.gmra.mrb[0].mxu0 %v291
  %v470 = vpop.f32.mrb[0].mxu0
  %v471 = vadd.f32 %v86, %v470
  %v472 = vpop.f32.mrb[0].mxu0
  %v473 = vpop.f32.mrb[0].mxu0
  %v474 = vadd.f32 %v86, %v473
  %v475 = vpop.f32.mrb[0].mxu0
  %476 = vmatprep.mubr.bf16.mxu0 0
  %477 = vmatmul.mubr.bf16.gmra.mrb[0].mxu0 %v294
  %v478 = vpop.f32.mrb[0].mxu0
  %v479 = vadd.f32 %v86, %v478
  %v480 = vpop.f32.mrb[0].mxu0
  %v481 = vpop.f32.mrb[0].mxu0
  %v482 = vadd.f32 %v86, %v481
  %v483 = vpop.f32.mrb[0].mxu0
  %484 = vmatprep.mubr.bf16.mxu0 0
  %485 = vmatmul.mubr.bf16.gmra.mrb[0].mxu0 %v297
  %v486 = vpop.f32.mrb[0].mxu0
  %v487 = vadd.f32 %v86, %v486
  %v488 = vpop.f32.mrb[0].mxu0
  %v489 = vpop.f32.mrb[0].mxu0
  %v490 = vadd.f32 %v86, %v489
  %v491 = vpop.f32.mrb[0].mxu0
  %492 = vmatprep.mubr.bf16.mxu0 0
  %493 = vmatmul.mubr.bf16.gmra.mrb[0].mxu0 %v300
  %v494 = vpop.f32.mrb[0].mxu0
  %v495 = vadd.f32 %v86, %v494
  %v496 = vpop.f32.mrb[0].mxu0
  %v497 = vpop.f32.mrb[0].mxu0
  %v498 = vadd.f32 %v86, %v497
  %v499 = vpop.f32.mrb[0].mxu0
  %500 = vmatprep.mubr.bf16.mxu0 0
  %501 = vmatmul.mubr.bf16.gmra.mrb[0].mxu0 %v303
  %v502 = vpop.f32.mrb[0].mxu0
  %v503 = vadd.f32 %v86, %v502
  %v504 = vpop.f32.mrb[0].mxu0
  %v505 = vpop.f32.mrb[0].mxu0
  %v506 = vadd.f32 %v86, %v505
  %v507 = vpop.f32.mrb[0].mxu0
  %508 = vmatprep.mubr.bf16.mxu0 0
  %509 = vmatmul.mubr.bf16.gmra.mrb[0].mxu0 %v306
  %v510 = vpop.f32.mrb[0].mxu0
  %v511 = vadd.f32 %v86, %v510
  %v512 = vpop.f32.mrb[0].mxu0
  %v513 = vpop.f32.mrb[0].mxu0
  %v514 = vadd.f32 %v86, %v513
  %v515 = vpop.f32.mrb[0].mxu0
  %516 = vmatprep.mubr.bf16.mxu0 0
  %517 = vmatmul.mubr.bf16.gmra.mrb[0].mxu0 %v309
  %v518 = vpop.f32.mrb[0].mxu0
  %v519 = vadd.f32 %v86, %v518
  %v520 = vpop.f32.mrb[0].mxu0
  %v521 = vpop.f32.mrb[0].mxu0
  %v522 = vadd.f32 %v86, %v521
  %v523 = vpop.f32.mrb[0].mxu0
  %524 = vmatprep.mubr.bf16.mxu0 0
  %525 = vmatmul.mubr.bf16.gmra.mrb[0].mxu0 %v312
  %v526 = vpop.f32.mrb[0].mxu0
  %v527 = vadd.f32 %v86, %v526
  %v528 = vpop.f32.mrb[0].mxu0
  %v529 = vpop.f32.mrb[0].mxu0
  %v530 = vadd.f32 %v86, %v529
  %v531 = vpop.f32.mrb[0].mxu0
  %532 = vmatprep.mubr.bf16.mxu0 0
  %533 = vmatmul.mubr.bf16.gmra.mrb[0].mxu0 %v315
  %v534 = vpop.f32.mrb[0].mxu0
  %v535 = vadd.f32 %v86, %v534
  %v536 = vpop.f32.mrb[0].mxu0
  %v537 = vpop.f32.mrb[0].mxu0
  %v538 = vadd.f32 %v86, %v537
  %v539 = vpop.f32.mrb[0].mxu0
  %540 = vmatprep.mubr.bf16.mxu0 0
  %541 = vmatmul.mubr.bf16.gmra.mrb[0].mxu0 %v318
  %v542 = vpop.f32.mrb[0].mxu0
  %v543 = vadd.f32 %v86, %v542
  %v544 = vpop.f32.mrb[0].mxu0
  %v545 = vpop.f32.mrb[0].mxu0
  %v546 = vadd.f32 %v86, %v545
  %v547 = vpop.f32.mrb[0].mxu0
  %548 = vmatprep.mubr.bf16.mxu0 0
  %549 = vmatmul.mubr.bf16.gmra.mrb[0].mxu0 %v321
  %v550 = vpop.f32.mrb[0].mxu0
  %v551 = vadd.f32 %v86, %v550
  %v552 = vpop.f32.mrb[0].mxu0
  %v553 = vpop.f32.mrb[0].mxu0
  %v554 = vadd.f32 %v86, %v553
  %v555 = vpop.f32.mrb[0].mxu0
  %556 = vmatprep.mubr.bf16.mxu0 0
  %557 = vmatmul.mubr.bf16.gmra.mrb[0].mxu0 %v324
  %v558 = vpop.f32.mrb[0].mxu0
  %v559 = vadd.f32 %v86, %v558
  %v560 = vpop.f32.mrb[0].mxu0
  %v561 = vpop.f32.mrb[0].mxu0
  %v562 = vadd.f32 %v86, %v561
  %v563 = vpop.f32.mrb[0].mxu0
  %564 = vmatprep.mubr.bf16.mxu0 0
  %565 = vmatmul.mubr.bf16.gmra.mrb[0].mxu0 %v327
  %v566 = vpop.f32.mrb[0].mxu0
  %v567 = vadd.f32 %v86, %v566
  %v568 = vpop.f32.mrb[0].mxu0
  %v569 = vpop.f32.mrb[0].mxu0
  %v570 = vadd.f32 %v86, %v569
  %v571 = vpop.f32.mrb[0].mxu0
  %572 = vmatprep.mubr.bf16.mxu0 0
  %573 = vmatmul.mubr.bf16.gmra.mrb[0].mxu0 %v330
  %v574 = vpop.f32.mrb[0].mxu0
  %v575 = vadd.f32 %v86, %v574
  %v576 = vpop.f32.mrb[0].mxu0
  %v577 = vpop.f32.mrb[0].mxu0
  %v578 = vadd.f32 %v86, %v577
  %v579 = vpop.f32.mrb[0].mxu0
  %580 = vmatprep.mubr.bf16.mxu0 0
  %581 = vmatmul.mubr.bf16.gmra.mrb[0].mxu0 %v333
  %v582 = vpop.f32.mrb[0].mxu0
  %v583 = vadd.f32 %v86, %v582
  %v584 = vpop.f32.mrb[0].mxu0
  %v585 = vpop.f32.mrb[0].mxu0
  %v586 = vadd.f32 %v86, %v585
  %v587 = vpop.f32.mrb[0].mxu0
  %588 = vmatprep.mubr.bf16.mxu0 0
  %589 = vmatmul.mubr.bf16.gmra.mrb[0].mxu0 %v336
  %v590 = vpop.f32.mrb[0].mxu0
  %v591 = vadd.f32 %v86, %v590
  %v592 = vpop.f32.mrb[0].mxu0
  %v593 = vpop.f32.mrb[0].mxu0
  %v594 = vadd.f32 %v86, %v593
  %v595 = vpop.f32.mrb[0].mxu0
  %596 = vmatprep.mubr.bf16.mxu0 0
  %597 = vmatmul.mubr.bf16.gmra.mrb[0].mxu0 %v339
  %v598 = vpop.f32.mrb[0].mxu0
  %v599 = vadd.f32 %v86, %v598
  %v600 = vpop.f32.mrb[0].mxu0
  %v601 = vpop.f32.mrb[0].mxu0
  %v602 = vadd.f32 %v86, %v601
  %v603 = vpop.f32.mrb[0].mxu0
  %604 = vmatprep.mubr.bf16.mxu0 0
  %605 = vmatmul.mubr.bf16.gmra.mrb[0].mxu0 %v342
  %v606 = vpop.f32.mrb[0].mxu0
  %v607 = vadd.f32 %v86, %v606
  %v608 = vpop.f32.mrb[0].mxu0
  %v609 = vpop.f32.mrb[0].mxu0
  %v610 = vadd.f32 %v86, %v609
  %v611 = vpop.f32.mrb[0].mxu0
  %612 = vmatprep.mubr.bf16.mxu0 0
  %613 = vmatmul.mubr.bf16.gmra.mrb[0].mxu0 %v345
  %v614 = vpop.f32.mrb[0].mxu0
  %v615 = vadd.f32 %v86, %v614
  %v616 = vpop.f32.mrb[0].mxu0
  %v617 = vpop.f32.mrb[0].mxu0
  %v618 = vadd.f32 %v86, %v617
  %v619 = vpop.f32.mrb[0].mxu0
  %620 = vmatprep.mubr.bf16.mxu0 0
  %621 = vmatmul.mubr.bf16.gmra.mrb[0].mxu0 %v348
  %v622 = vpop.f32.mrb[0].mxu0
  %v623 = vadd.f32 %v86, %v622
  %v624 = vpop.f32.mrb[0].mxu0
  %v625 = vpop.f32.mrb[0].mxu0
  %v626 = vadd.f32 %v86, %v625
  %v627 = vpop.f32.mrb[0].mxu0
  %628 = vmatprep.mubr.bf16.mxu0 0
  %629 = vmatmul.mubr.bf16.gmra.mrb[0].mxu0 %v351
  %v630 = vpop.f32.mrb[0].mxu0
  %v631 = vadd.f32 %v86, %v630
  %v632 = vpop.f32.mrb[0].mxu0
  %v633 = vpop.f32.mrb[0].mxu0
  %v634 = vadd.f32 %v86, %v633
  %v635 = vpop.f32.mrb[0].mxu0
  %636 = vmatprep.mubr.bf16.mxu0 0
  %637 = vmatmul.mubr.bf16.gmra.mrb[0].mxu0 %v354
  %v638 = vpop.f32.mrb[0].mxu0
  %v639 = vadd.f32 %v86, %v638
  %v640 = vpop.f32.mrb[0].mxu0
  %v641 = vpop.f32.mrb[0].mxu0
  %v642 = vadd.f32 %v86, %v641
  %v643 = vpop.f32.mrb[0].mxu0
  %644 = vdwg.mxu0
  %v645 = vmax.f32 %v391, 0.0
  %v646 = vmax.f32 %v394, 0.0
  %v647 = vmax.f32 %v399, 0.0
  %v648 = vmax.f32 %v402, 0.0
  %v649 = vmax.f32 %v407, 0.0
  %v650 = vmax.f32 %v410, 0.0
  %v651 = vmax.f32 %v415, 0.0
  %v652 = vmax.f32 %v418, 0.0
  %v653 = vmax.f32 %v423, 0.0
  %v654 = vmax.f32 %v426, 0.0
  %v655 = vmax.f32 %v431, 0.0
  %v656 = vmax.f32 %v434, 0.0
  %v657 = vmax.f32 %v439, 0.0
  %v658 = vmax.f32 %v442, 0.0
  %v659 = vmax.f32 %v447, 0.0
  %v660 = vmax.f32 %v450, 0.0
  %v661 = vmax.f32 %v455, 0.0
  %v662 = vmax.f32 %v458, 0.0
  %v663 = vmax.f32 %v463, 0.0
  %v664 = vmax.f32 %v466, 0.0
  %v665 = vmax.f32 %v471, 0.0
  %v666 = vmax.f32 %v474, 0.0
  %v667 = vmax.f32 %v479, 0.0
  %v668 = vmax.f32 %v482, 0.0
  %v669 = vmax.f32 %v487, 0.0
  %v670 = vmax.f32 %v490, 0.0
  %v671 = vmax.f32 %v495, 0.0
  %v672 = vmax.f32 %v498, 0.0
  %v673 = vmax.f32 %v503, 0.0
  %v674 = vmax.f32 %v506, 0.0
  %v675 = vmax.f32 %v511, 0.0
  %v676 = vmax.f32 %v514, 0.0
  %v677 = vmax.f32 %v519, 0.0
  %v678 = vmax.f32 %v522, 0.0
  %v679 = vmax.f32 %v527, 0.0
  %v680 = vmax.f32 %v530, 0.0
  %v681 = vmax.f32 %v535, 0.0
  %v682 = vmax.f32 %v538, 0.0
  %v683 = vmax.f32 %v543, 0.0
  %v684 = vmax.f32 %v546, 0.0
  %v685 = vmax.f32 %v551, 0.0
  %v686 = vmax.f32 %v554, 0.0
  %v687 = vmax.f32 %v559, 0.0
  %v688 = vmax.f32 %v562, 0.0
  %v689 = vmax.f32 %v567, 0.0
  %v690 = vmax.f32 %v570, 0.0
  %v691 = vmax.f32 %v575, 0.0
  %v692 = vmax.f32 %v578, 0.0
  %v693 = vmax.f32 %v583, 0.0
  %v694 = vmax.f32 %v586, 0.0
  %v695 = vmax.f32 %v591, 0.0
  %v696 = vmax.f32 %v594, 0.0
  %v697 = vmax.f32 %v599, 0.0
  %v698 = vmax.f32 %v602, 0.0
  %v699 = vmax.f32 %v607, 0.0
  %v700 = vmax.f32 %v610, 0.0
  %v701 = vmax.f32 %v615, 0.0
  %v702 = vmax.f32 %v618, 0.0
  %v703 = vmax.f32 %v623, 0.0
  %v704 = vmax.f32 %v626, 0.0
  %v705 = vmax.f32 %v631, 0.0
  %v706 = vmax.f32 %v634, 0.0
  %v707 = vmax.f32 %v639, 0.0
  %v708 = vmax.f32 %v642, 0.0
  %v709 = vsel %vm259, %v645, 0.0
  %v710 = vsel %vm259, %v646, 0.0
  %v711 = vadd.f32 %v709, %v710
  %v712 = vsel %vm259, %v647, 0.0
  %v713 = vadd.f32 %v711, %v712
  %v714 = vsel %vm259, %v648, 0.0
  %v715 = vadd.f32 %v713, %v714
  %v716 = vsel %vm259, %v649, 0.0
  %v717 = vadd.f32 %v715, %v716
  %v718 = vsel %vm259, %v650, 0.0
  %v719 = vadd.f32 %v717, %v718
  %v720 = vsel %vm259, %v651, 0.0
  %v721 = vadd.f32 %v719, %v720
  %v722 = vsel %vm259, %v652, 0.0
  %v723 = vadd.f32 %v721, %v722
  %v724 = vsel %vm259, %v653, 0.0
  %v725 = vadd.f32 %v723, %v724
  %v726 = vsel %vm259, %v654, 0.0
  %v727 = vadd.f32 %v725, %v726
  %v728 = vsel %vm259, %v655, 0.0
  %v729 = vadd.f32 %v727, %v728
  %v730 = vsel %vm259, %v656, 0.0
  %v731 = vadd.f32 %v729, %v730
  %v732 = vsel %vm259, %v657, 0.0
  %v733 = vadd.f32 %v731, %v732
  %v734 = vsel %vm259, %v658, 0.0
  %v735 = vadd.f32 %v733, %v734
  %v736 = vsel %vm259, %v659, 0.0
  %v737 = vadd.f32 %v735, %v736
  %v738 = vsel %vm259, %v660, 0.0
  %v739 = vadd.f32 %v737, %v738
  %v740 = vsel %vm259, %v661, 0.0
  %v741 = vadd.f32 %v739, %v740
  %v742 = vsel %vm259, %v662, 0.0
  %v743 = vadd.f32 %v741, %v742
  %v744 = vsel %vm259, %v663, 0.0
  %v745 = vadd.f32 %v743, %v744
  %v746 = vsel %vm259, %v664, 0.0
  %v747 = vadd.f32 %v745, %v746
  %v748 = vsel %vm259, %v665, 0.0
  %v749 = vadd.f32 %v747, %v748
  %v750 = vsel %vm259, %v666, 0.0
  %v751 = vadd.f32 %v749, %v750
  %v752 = vsel %vm259, %v667, 0.0
  %v753 = vadd.f32 %v751, %v752
  %v754 = vsel %vm259, %v668, 0.0
  %v755 = vadd.f32 %v753, %v754
  %v756 = vsel %vm259, %v669, 0.0
  %v757 = vadd.f32 %v755, %v756
  %v758 = vsel %vm259, %v670, 0.0
  %v759 = vadd.f32 %v757, %v758
  %v760 = vsel %vm259, %v671, 0.0
  %v761 = vadd.f32 %v759, %v760
  %v762 = vsel %vm259, %v672, 0.0
  %v763 = vadd.f32 %v761, %v762
  %v764 = vsel %vm259, %v673, 0.0
  %v765 = vadd.f32 %v763, %v764
  %v766 = vsel %vm259, %v674, 0.0
  %v767 = vadd.f32 %v765, %v766
  %v768 = vsel %vm259, %v675, 0.0
  %v769 = vadd.f32 %v767, %v768
  %v770 = vsel %vm259, %v676, 0.0
  %v771 = vadd.f32 %v769, %v770
  %v772 = vrot.slane %v771, 4
  %v773 = vadd.f32 %v771, %v772
  %v774 = vrot.slane %v773, 2
  %v775 = vadd.f32 %v773, %v774
  %v776 = vrot.slane %v775, 1
  %v777 = vadd.f32 %v775, %v776
  %v778 = vsel %vm259, %v677, 0.0
  %v779 = vsel %vm259, %v678, 0.0
  %v780 = vadd.f32 %v778, %v779
  %v781 = vsel %vm259, %v679, 0.0
  %v782 = vadd.f32 %v780, %v781
  %v783 = vsel %vm259, %v680, 0.0
  %v784 = vadd.f32 %v782, %v783
  %v785 = vsel %vm259, %v681, 0.0
  %v786 = vadd.f32 %v784, %v785
  %v787 = vsel %vm259, %v682, 0.0
  %v788 = vadd.f32 %v786, %v787
  %v789 = vsel %vm259, %v683, 0.0
  %v790 = vadd.f32 %v788, %v789
  %v791 = vsel %vm259, %v684, 0.0
  %v792 = vadd.f32 %v790, %v791
  %v793 = vsel %vm259, %v685, 0.0
  %v794 = vadd.f32 %v792, %v793
  %v795 = vsel %vm259, %v686, 0.0
  %v796 = vadd.f32 %v794, %v795
  %v797 = vsel %vm259, %v687, 0.0
  %v798 = vadd.f32 %v796, %v797
  %v799 = vsel %vm259, %v688, 0.0
  %v800 = vadd.f32 %v798, %v799
  %v801 = vsel %vm259, %v689, 0.0
  %v802 = vadd.f32 %v800, %v801
  %v803 = vsel %vm259, %v690, 0.0
  %v804 = vadd.f32 %v802, %v803
  %v805 = vsel %vm259, %v691, 0.0
  %v806 = vadd.f32 %v804, %v805
  %v807 = vsel %vm259, %v692, 0.0
  %v808 = vadd.f32 %v806, %v807
  %v809 = vsel %vm259, %v693, 0.0
  %v810 = vadd.f32 %v808, %v809
  %v811 = vsel %vm259, %v694, 0.0
  %v812 = vadd.f32 %v810, %v811
  %v813 = vsel %vm259, %v695, 0.0
  %v814 = vadd.f32 %v812, %v813
  %v815 = vsel %vm259, %v696, 0.0
  %v816 = vadd.f32 %v814, %v815
  %v817 = vsel %vm259, %v697, 0.0
  %v818 = vadd.f32 %v816, %v817
  %v819 = vsel %vm259, %v698, 0.0
  %v820 = vadd.f32 %v818, %v819
  %v821 = vsel %vm259, %v699, 0.0
  %v822 = vadd.f32 %v820, %v821
  %v823 = vsel %vm259, %v700, 0.0
  %v824 = vadd.f32 %v822, %v823
  %v825 = vsel %vm259, %v701, 0.0
  %v826 = vadd.f32 %v824, %v825
  %v827 = vsel %vm259, %v702, 0.0
  %v828 = vadd.f32 %v826, %v827
  %v829 = vsel %vm259, %v703, 0.0
  %v830 = vadd.f32 %v828, %v829
  %v831 = vsel %vm259, %v704, 0.0
  %v832 = vadd.f32 %v830, %v831
  %v833 = vsel %vm259, %v705, 0.0
  %v834 = vadd.f32 %v832, %v833
  %v835 = vsel %vm259, %v706, 0.0
  %v836 = vadd.f32 %v834, %v835
  %v837 = vsel %vm259, %v707, 0.0
  %v838 = vadd.f32 %v836, %v837
  %v839 = vsel %vm259, %v708, 0.0
  %v840 = vadd.f32 %v838, %v839
  %v841 = vrot.slane %v840, 4
  %v842 = vadd.f32 %v840, %v841
  %v843 = vrot.slane %v842, 2
  %v844 = vadd.f32 %v842, %v843
  %v845 = vrot.slane %v844, 1
  %v846 = vadd.f32 %v844, %v845
  %v847 = vrcp.pop 256.0
  %v848 = vmul.f32 %v777, %v847
  %v849 = vmul.f32 %v846, %v847
  %v850 = vld [vmem:[%s3] sm:$0x3]
  %v851 = vld [vmem:[%s3 + $0x2] sm:$0x3]
  %v852 = vpack.c.bf16 %v850, %v850
  %v853 = vld [vmem:[%s1 + $0x140] sm:$0xf]
  %v854 = vld [vmem:[%s1 + $0x148] sm:$0xf]
  %v855 = vld [vmem:[%s1 + $0x150] sm:$0xf]
  %v856 = vld [vmem:[%s1 + $0x158] sm:$0xf]
  %v857 = vld [vmem:[%s1 + $0x160] sm:$0xf]
  %v858 = vld [vmem:[%s1 + $0x168] sm:$0xf]
  %v859 = vld [vmem:[%s1 + $0x170] sm:$0xf]
  %v860 = vld [vmem:[%s1 + $0x178] sm:$0xf]
  %v861 = vld [vmem:[%s2 + $0x1] ss:$0 sm:$0xff]
  %v870 = vunpack.c.l.b16 %v853
  %v871 = vunpack.c.l.b16 %v854
  %v872 = vunpack.c.l.b16 %v855
  %v873 = vunpack.c.l.b16 %v856
  %v874 = vunpack.c.l.b16 %v857
  %v875 = vunpack.c.l.b16 %v858
  %v876 = vunpack.c.l.b16 %v859
  %v877 = vunpack.c.l.b16 %v860
  %v878 = vpack.c.b16 %v871, %v870
  %v879 = vpack.c.b16 %v873, %v872
  %v880 = vpack.c.b16 %v875, %v874
  %v881 = vpack.c.b16 %v877, %v876
  %vm886 = vcmask 523264
  %v888 = vsel %vm886, %v852, 0
  %890 = vmatprep.subr.bf16.mxu0 0
  %891 = vmatpush1.bf16.msra.mxu0 %v878
  %892 = vmatprep.subr.bf16.mxu0 0
  %893 = vmatpush1.bf16.msra.mxu0 %v879
  %894 = vmatprep.subr.bf16.mxu0 0
  %895 = vmatpush1.bf16.msra.mxu0 %v880
  %896 = vmatprep.subr.bf16.mxu0 0
  %897 = vmatpush1.bf16.msra.mxu0 %v881
  %898 = vmatprep.subr.bf16.mxu0 0
  %899 = vmatpush1.bf16.msra.mxu0 0
  %900 = vmatprep.subr.bf16.mxu0 0
  %901 = vmatpush1.bf16.msra.mxu0 0
  %902 = vmatprep.subr.bf16.mxu0 0
  %903 = vmatpush1.bf16.msra.mxu0 0
  %904 = vmatprep.subr.bf16.mxu0 0
  %905 = vmatpush1.bf16.msra.mxu0 0
  %906 = vmatprep.subr.bf16.mxu0 0
  %907 = vmatpush1.bf16.msra.mxu0 0
  %908 = vmatprep.subr.bf16.mxu0 0
  %909 = vmatpush1.bf16.msra.mxu0 0
  %910 = vmatprep.subr.bf16.mxu0 0
  %911 = vmatpush1.bf16.msra.mxu0 0
  %912 = vmatprep.subr.bf16.mxu0 0
  %913 = vmatpush1.bf16.msra.mxu0 0
  %914 = vmatprep.subr.bf16.mxu0 0
  %915 = vmatpush1.bf16.msra.mxu0 0
  %916 = vmatprep.subr.bf16.mxu0 0
  %917 = vmatpush1.bf16.msra.mxu0 0
  %918 = vmatprep.subr.bf16.mxu0 0
  %919 = vmatpush1.bf16.msra.mxu0 0
  %920 = vmatprep.subr.bf16.mxu0 0
  %921 = vmatpush1.bf16.msra.mxu0 0
  %922 = vmatprep.mubr.bf16.mxu0 0
  %923 = vmatmul.mubr.bf16.gmra.mrb[0].mxu0 %v888
  %v924 = vpop.f32.mrb[0].mxu0
  %v925 = vadd.f32 %v861, %v924
  %v926 = vpop.f32.mrb[0].mxu0
  %v927 = vpop.f32.mrb[0].mxu0
  %v928 = vpop.f32.mrb[0].mxu0
  %929 = vdwg.mxu0
  %v930 = vmax.f32 %v925, 0.0
  %vm933 = vcmask 1041409
  %v934 = vsel %vm933, %v849, %v848
  %937 = vrot.lane.b32.xlu0 %v930, 32
  %v938 = vpop.permute.xlu0 %937
  %v940 = vsel %vm259, %v934, %v938
  %v941 = vpack.c.bf16 %v940, %v940
  %v942 = vld [vmem:[%s1 + $0x20] sm:$0xf]
  %v943 = vld [vmem:[%s1 + $0x28] sm:$0xf]
  %v944 = vld [vmem:[%s1 + $0x30] sm:$0xf]
  %v945 = vld [vmem:[%s1 + $0x38] sm:$0xf]
  %v946 = vld [vmem:[%s1 + $0x40] sm:$0xf]
  %v947 = vld [vmem:[%s1 + $0x48] sm:$0xf]
  %v948 = vld [vmem:[%s1 + $0x50] sm:$0xf]
  %v949 = vld [vmem:[%s1 + $0x58] sm:$0xf]
  %v950 = vld [vmem:[%s1 + $0x60] sm:$0xf]
  %v951 = vld [vmem:[%s1 + $0x68] sm:$0xf]
  %v952 = vld [vmem:[%s1 + $0x70] sm:$0xf]
  %v953 = vld [vmem:[%s1 + $0x78] sm:$0xf]
  %v954 = vld [vmem:[%s2 + $0x2] ss:$0 sm:$0xff]
  %v967 = vunpack.c.l.b16 %v942
  %v968 = vunpack.c.l.b16 %v943
  %v969 = vunpack.c.l.b16 %v944
  %v970 = vunpack.c.l.b16 %v945
  %v971 = vunpack.c.l.b16 %v946
  %v972 = vunpack.c.l.b16 %v947
  %v973 = vunpack.c.l.b16 %v948
  %v974 = vunpack.c.l.b16 %v949
  %v975 = vunpack.c.l.b16 %v950
  %v976 = vunpack.c.l.b16 %v951
  %v977 = vunpack.c.l.b16 %v952
  %v978 = vunpack.c.l.b16 %v953
  %v979 = vpack.c.b16 %v968, %v967
  %v980 = vpack.c.b16 %v970, %v969
  %v981 = vpack.c.b16 %v972, %v971
  %v982 = vpack.c.b16 %v974, %v973
  %v983 = vpack.c.b16 %v976, %v975
  %v984 = vpack.c.b16 %v978, %v977
  %vm991 = vcmask 785408
  %v993 = vsel %vm991, %v941, 0
  %995 = vmatprep.subr.bf16.mxu0 0
  %996 = vmatpush1.bf16.msra.mxu0 %v979
  %997 = vmatprep.subr.bf16.mxu0 0
  %998 = vmatpush1.bf16.msra.mxu0 %v980
  %999 = vmatprep.subr.bf16.mxu0 0
  %1000 = vmatpush1.bf16.msra.mxu0 %v981
  %1001 = vmatprep.subr.bf16.mxu0 0
  %1002 = vmatpush1.bf16.msra.mxu0 %v982
  %1003 = vmatprep.subr.bf16.mxu0 0
  %1004 = vmatpush1.bf16.msra.mxu0 %v983
  %1005 = vmatprep.subr.bf16.mxu0 0
  %1006 = vmatpush1.bf16.msra.mxu0 %v984
  %1007 = vmatprep.subr.bf16.mxu0 0
  %1008 = vmatpush1.bf16.msra.mxu0 0
  %1009 = vmatprep.subr.bf16.mxu0 0
  %1010 = vmatpush1.bf16.msra.mxu0 0
  %1011 = vmatprep.subr.bf16.mxu0 0
  %1012 = vmatpush1.bf16.msra.mxu0 0
  %1013 = vmatprep.subr.bf16.mxu0 0
  %1014 = vmatpush1.bf16.msra.mxu0 0
  %1015 = vmatprep.subr.bf16.mxu0 0
  %1016 = vmatpush1.bf16.msra.mxu0 0
  %1017 = vmatprep.subr.bf16.mxu0 0
  %1018 = vmatpush1.bf16.msra.mxu0 0
  %1019 = vmatprep.subr.bf16.mxu0 0
  %1020 = vmatpush1.bf16.msra.mxu0 0
  %1021 = vmatprep.subr.bf16.mxu0 0
  %1022 = vmatpush1.bf16.msra.mxu0 0
  %1023 = vmatprep.subr.bf16.mxu0 0
  %1024 = vmatpush1.bf16.msra.mxu0 0
  %1025 = vmatprep.subr.bf16.mxu0 0
  %1026 = vmatpush1.bf16.msra.mxu0 0
  %1027 = vmatprep.mubr.bf16.mxu0 0
  %1028 = vmatmul.mubr.bf16.gmra.mrb[0].mxu0 %v993
  %v1029 = vpop.f32.mrb[0].mxu0
  %v1030 = vadd.f32 %v954, %v1029
  %v1031 = vpop.f32.mrb[0].mxu0
  %v1032 = vpop.f32.mrb[0].mxu0
  %v1033 = vpop.f32.mrb[0].mxu0
  %1034 = vdwg.mxu0
  %vm1035 = vcmask 1041408
  %v1036 = vsel %vm1035, %v1030, 0.0
  %v1037 = vrot.slane %v1036, 4
  %v1038 = vadd.f32 %v1036, %v1037
  %v1039 = vrot.slane %v1038, 2
  %v1040 = vadd.f32 %v1038, %v1039
  %v1041 = vrot.slane %v1040, 1
  %v1042 = vadd.f32 %v1040, %v1041
  %v1043 = vrcp.pop 2.0
  %v1044 = vmul.f32 %v1042, %v1043
  %v1045 = vsub.f32 %v1030, %v1044
  %v1046 = vmul.f32 %v1045, %v1045
  %v1047 = vsel %vm1035, %v1046, 0.0
  %v1048 = vrot.slane %v1047, 4
  %v1049 = vadd.f32 %v1047, %v1048
  %v1050 = vrot.slane %v1049, 2
  %v1051 = vadd.f32 %v1049, %v1050
  %v1052 = vrot.slane %v1051, 1
  %v1053 = vadd.f32 %v1051, %v1052
  %v1054 = vmul.f32 %v1053, %v1043
  %v1055 = vadd.f32 %v1054, 1e-05
  %v1056 = vrsqrt.pop %v1055
  %v1057 = vmul.f32 %v1045, %v1056
  %v1058 = vld [vmem:[%s2 + $0x3] ss:$0 sm:$0xff]
  %v1059 = vmul.f32 %v1057, %v1058
  %v1060 = vld [vmem:[%s2 + $0x4] ss:$0 sm:$0xff]
  %v1061 = vadd.f32 %v1059, %v1060
  %v1062 = vmax.f32 %v1061, 0.0
  %v1065 = vunpack.c.l.s4 1983009808
  %v1066 = vunpack.c.0.s8 %v1065
  %v1067 = vlaneseq
  %v1068 = vshrl.u32 %v1067, 7
  %v1069 = vsub.s32 %v1066, %v1068
  %v1070 = vrot.slane %v850, %v1069
  %1071 = vrot.lane.b32.xlu0 %v1070, 64
  %v1072 = vpop.permute.xlu0 %1071
  %v1074 = vpack.c.bf16 %v1062, %v1062
  %v1075 = vpack.c.bf16 %v1072, %v1072
  %v1076 = vld [vmem:[%s1 + $0x80] sm:$0xff]
  %v1077 = vld [vmem:[%s1 + $0x88] sm:$0xff]
  %v1078 = vld [vmem:[%s1 + $0x90] sm:$0xff]
  %v1079 = vld [vmem:[%s1 + $0x98] sm:$0xff]
  %v1080 = vld [vmem:[%s1 + $0xa0] sm:$0xff]
  %v1081 = vld [vmem:[%s1 + $0xa8] sm:$0xff]
  %v1082 = vld [vmem:[%s1 + $0xb0] sm:$0xff]
  %v1083 = vld [vmem:[%s1 + $0xb8] sm:$0xff]
  %v1084 = vld [vmem:[%s1 + $0xc0] sm:$0xff]
  %v1085 = vld [vmem:[%s1 + $0xc8] sm:$0xff]
  %v1086 = vld [vmem:[%s1 + $0xd0] sm:$0xff]
  %v1087 = vld [vmem:[%s1 + $0xd8] sm:$0xff]
  %v1088 = vld [vmem:[%s1 + $0xe0] sm:$0xff]
  %v1089 = vld [vmem:[%s1 + $0xe8] sm:$0xff]
  %v1090 = vld [vmem:[%s1 + $0xf0] sm:$0xff]
  %v1091 = vld [vmem:[%s1 + $0xf8] sm:$0xff]
  %v1092 = vld [vmem:[%s1 + $0x100] sm:$0xff]
  %v1093 = vld [vmem:[%s1 + $0x108] sm:$0xff]
  %v1094 = vld [vmem:[%s1 + $0x110] sm:$0xff]
  %v1095 = vld [vmem:[%s1 + $0x118] sm:$0xff]
  %v1096 = vld [vmem:[%s1 + $0x120] sm:$0xff]
  %v1097 = vld [vmem:[%s1 + $0x128] sm:$0xff]
  %v1098 = vld [vmem:[%s1 + $0x130] sm:$0xff]
  %v1099 = vld [vmem:[%s1 + $0x138] sm:$0xff]
  %s1100 = scalar_lea.vmem %s2, 5
  %v1101 = vld [vmem:[%s1100] ss:$8 sm:$0x3]
  %v1103 = vlaneseq
  %v1104 = vshrl.u32 %v1103, 7
  %v1105 = vsub.s32 0, %v1104
  %v1106 = vrot.slane %v1101, %v1105
  %v1107 = vlaneseq
  %v1108 = vshrl.u32 %v1107, 7
  %v1109 = vsub.s32 1, %v1108
  %v1110 = vrot.slane %v1101, %v1109
  %v1137 = vunpack.c.l.b16 %v1076
  %v1138 = vunpack.c.h.b16 %v1076
  %v1139 = vunpack.c.l.b16 %v1077
  %v1140 = vunpack.c.h.b16 %v1077
  %v1141 = vunpack.c.l.b16 %v1078
  %v1142 = vunpack.c.h.b16 %v1078
  %v1143 = vunpack.c.l.b16 %v1079
  %v1144 = vunpack.c.h.b16 %v1079
  %v1145 = vunpack.c.l.b16 %v1080
  %v1146 = vunpack.c.h.b16 %v1080
  %v1147 = vunpack.c.l.b16 %v1081
  %v1148 = vunpack.c.h.b16 %v1081
  %v1149 = vunpack.c.l.b16 %v1082
  %v1150 = vunpack.c.h.b16 %v1082
  %v1151 = vunpack.c.l.b16 %v1083
  %v1152 = vunpack.c.h.b16 %v1083
  %v1153 = vunpack.c.l.b16 %v1084
  %v1154 = vunpack.c.h.b16 %v1084
  %v1155 = vunpack.c.l.b16 %v1085
  %v1156 = vunpack.c.h.b16 %v1085
  %v1157 = vunpack.c.l.b16 %v1086
  %v1158 = vunpack.c.h.b16 %v1086
  %v1159 = vunpack.c.l.b16 %v1087
  %v1160 = vunpack.c.h.b16 %v1087
  %v1161 = vunpack.c.l.b16 %v1088
  %v1162 = vunpack.c.h.b16 %v1088
  %v1163 = vunpack.c.l.b16 %v1089
  %v1164 = vunpack.c.h.b16 %v1089
  %v1165 = vunpack.c.l.b16 %v1090
  %v1166 = vunpack.c.h.b16 %v1090
  %v1167 = vunpack.c.l.b16 %v1091
  %v1168 = vunpack.c.h.b16 %v1091
  %v1169 = vunpack.c.l.b16 %v1092
  %v1170 = vunpack.c.h.b16 %v1092
  %v1171 = vunpack.c.l.b16 %v1093
  %v1172 = vunpack.c.h.b16 %v1093
  %v1173 = vunpack.c.l.b16 %v1094
  %v1174 = vunpack.c.h.b16 %v1094
  %v1175 = vunpack.c.l.b16 %v1095
  %v1176 = vunpack.c.h.b16 %v1095
  %v1177 = vunpack.c.l.b16 %v1096
  %v1178 = vunpack.c.h.b16 %v1096
  %v1179 = vunpack.c.l.b16 %v1097
  %v1180 = vunpack.c.h.b16 %v1097
  %v1181 = vunpack.c.l.b16 %v1098
  %v1182 = vunpack.c.h.b16 %v1098
  %v1183 = vunpack.c.l.b16 %v1099
  %v1184 = vunpack.c.h.b16 %v1099
  %v1185 = vpack.c.b16 %v1139, %v1137
  %v1186 = vpack.c.b16 %v1140, %v1138
  %v1187 = vpack.c.b16 %v1143, %v1141
  %v1188 = vpack.c.b16 %v1144, %v1142
  %v1189 = vpack.c.b16 %v1147, %v1145
  %v1190 = vpack.c.b16 %v1148, %v1146
  %v1191 = vpack.c.b16 %v1151, %v1149
  %v1192 = vpack.c.b16 %v1152, %v1150
  %v1193 = vpack.c.b16 %v1155, %v1153
  %v1194 = vpack.c.b16 %v1156, %v1154
  %v1195 = vpack.c.b16 %v1159, %v1157
  %v1196 = vpack.c.b16 %v1160, %v1158
  %v1197 = vpack.c.b16 %v1163, %v1161
  %v1198 = vpack.c.b16 %v1164, %v1162
  %v1199 = vpack.c.b16 %v1167, %v1165
  %v1200 = vpack.c.b16 %v1168, %v1166
  %v1201 = vpack.c.b16 %v1171, %v1169
  %v1202 = vpack.c.b16 %v1172, %v1170
  %v1203 = vpack.c.b16 %v1175, %v1173
  %v1204 = vpack.c.b16 %v1176, %v1174
  %v1205 = vpack.c.b16 %v1179, %v1177
  %v1206 = vpack.c.b16 %v1180, %v1178
  %v1207 = vpack.c.b16 %v1183, %v1181
  %v1208 = vpack.c.b16 %v1184, %v1182
  %v1234 = vsel %vm886, %v1075, 0
  %1236 = vmatprep.subr.bf16.mxu0 %v1186
  %1237 = vmatpush1.bf16.msra.mxu0 %v1185
  %1238 = vmatprep.subr.bf16.mxu0 %v1188
  %1239 = vmatpush1.bf16.msra.mxu0 %v1187
  %1240 = vmatprep.subr.bf16.mxu0 %v1190
  %1241 = vmatpush1.bf16.msra.mxu0 %v1189
  %1242 = vmatprep.subr.bf16.mxu0 %v1192
  %1243 = vmatpush1.bf16.msra.mxu0 %v1191
  %1244 = vmatprep.subr.bf16.mxu0 %v1194
  %1245 = vmatpush1.bf16.msra.mxu0 %v1193
  %1246 = vmatprep.subr.bf16.mxu0 %v1196
  %1247 = vmatpush1.bf16.msra.mxu0 %v1195
  %1248 = vmatprep.subr.bf16.mxu0 %v1198
  %1249 = vmatpush1.bf16.msra.mxu0 %v1197
  %1250 = vmatprep.subr.bf16.mxu0 %v1200
  %1251 = vmatpush1.bf16.msra.mxu0 %v1199
  %1252 = vmatprep.subr.bf16.mxu0 %v1202
  %1253 = vmatpush1.bf16.msra.mxu0 %v1201
  %1254 = vmatprep.subr.bf16.mxu0 %v1204
  %1255 = vmatpush1.bf16.msra.mxu0 %v1203
  %1256 = vmatprep.subr.bf16.mxu0 %v1206
  %1257 = vmatpush1.bf16.msra.mxu0 %v1205
  %1258 = vmatprep.subr.bf16.mxu0 %v1208
  %1259 = vmatpush1.bf16.msra.mxu0 %v1207
  %1260 = vmatprep.subr.bf16.mxu0 0
  %1261 = vmatpush1.bf16.msra.mxu0 0
  %1262 = vmatprep.subr.bf16.mxu0 0
  %1263 = vmatpush1.bf16.msra.mxu0 0
  %1264 = vmatprep.subr.bf16.mxu0 0
  %1265 = vmatpush1.bf16.msra.mxu0 0
  %1266 = vmatprep.subr.bf16.mxu0 0
  %1267 = vmatpush1.bf16.msra.mxu0 0
  %1268 = vmatprep.mubr.bf16.mxu0 %v1234
  %1269 = vmatmul.mubr.bf16.gmra.mrb[0].mxu0 %v1074
  %v1270 = vpop.f32.mrb[0].mxu0
  %v1271 = vadd.f32 %v1106, %v1270
  %v1272 = vpop.f32.mrb[0].mxu0
  %v1273 = vadd.f32 %v1110, %v1272
  %v1274 = vpop.f32.mrb[0].mxu0
  %v1275 = vpop.f32.mrb[0].mxu0
  %1276 = vdwg.mxu0
  %v1277 = vxor.u32 %v1271, 2147483648
  %v1278 = vmul.f32 %v1277, 1.442695
  %v1279 = vpow.pop %v1278
  %v1280 = vadd.f32 %v1279, 1.0
  %v1281 = vrcp.pop %v1280
  %v1282 = vmul.f32 1.0, %v1281
  %v1283 = vtanh.pop %v1273
  %v1284 = vxor.u32 %v1273, 2147483648
  %v1285 = vmul.f32 %v1284, 1.442695
  %v1286 = vpow.pop %v1285
  %v1287 = vadd.f32 %v1286, 1.0
  %v1288 = vrcp.pop %v1287
  %v1289 = vmul.f32 1.0, %v1288
  %v1292 = vunpack.c.l.s4 1983009808
  %v1293 = vunpack.c.0.s8 %v1292
  %v1294 = vlaneseq
  %v1295 = vshrl.u32 %v1294, 7
  %v1296 = vsub.s32 %v1293, %v1295
  %v1297 = vrot.slane %v851, %v1296
  %1298 = vrot.lane.b32.xlu0 %v1297, 64
  %v1299 = vpop.permute.xlu0 %1298
  %v1301 = vmul.f32 %v1282, %v1299
  %v1302 = vmul.f32 %v1282, %v1283
  %1304 = vrot.lane.b32.xlu0 %v1302, 64
  %v1305 = vpop.permute.xlu0 %1304
  %v1307 = vadd.f32 %v1301, %v1305
  %v1308 = vtanh.pop %v1307
  %v1309 = vmul.f32 %v1289, %v1308
  %v1310 = vpack.c.bf16 %v1309, %v1309
  %v1311 = vld [vmem:[%s1 + $0x180] sm:$0xf]
  %v1312 = vld [vmem:[%s1 + $0x188] sm:$0xf]
  %v1313 = vld [vmem:[%s1 + $0x190] sm:$0xf]
  %v1314 = vld [vmem:[%s1 + $0x198] sm:$0xf]
  %v1315 = vld [vmem:[%s1 + $0x1a0] sm:$0xf]
  %v1316 = vld [vmem:[%s1 + $0x1a8] sm:$0xf]
  %v1317 = vld [vmem:[%s1 + $0x1b0] sm:$0xf]
  %v1318 = vld [vmem:[%s1 + $0x1b8] sm:$0xf]
  %v1319 = vld [vmem:[%s2 + $0x6] ss:$0 sm:$0xff]
  %1321 = vrot.lane.b32.xlu0 %v1310, 64
  %v1322 = vpop.permute.xlu0 %1321
  %v1331 = vunpack.c.l.b16 %v1311
  %v1332 = vunpack.c.l.b16 %v1312
  %v1333 = vunpack.c.l.b16 %v1313
  %v1334 = vunpack.c.l.b16 %v1314
  %v1335 = vunpack.c.l.b16 %v1315
  %v1336 = vunpack.c.l.b16 %v1316
  %v1337 = vunpack.c.l.b16 %v1317
  %v1338 = vunpack.c.l.b16 %v1318
  %v1339 = vpack.c.b16 %v1332, %v1331
  %v1340 = vpack.c.b16 %v1334, %v1333
  %v1341 = vpack.c.b16 %v1336, %v1335
  %v1342 = vpack.c.b16 %v1338, %v1337
  %v1348 = vsel %vm886, %v1322, 0
  %1350 = vmatprep.subr.bf16.mxu0 0
  %1351 = vmatpush1.bf16.msra.mxu0 %v1339
  %1352 = vmatprep.subr.bf16.mxu0 0
  %1353 = vmatpush1.bf16.msra.mxu0 %v1340
  %1354 = vmatprep.subr.bf16.mxu0 0
  %1355 = vmatpush1.bf16.msra.mxu0 %v1341
  %1356 = vmatprep.subr.bf16.mxu0 0
  %1357 = vmatpush1.bf16.msra.mxu0 %v1342
  %1358 = vmatprep.subr.bf16.mxu0 0
  %1359 = vmatpush1.bf16.msra.mxu0 0
  %1360 = vmatprep.subr.bf16.mxu0 0
  %1361 = vmatpush1.bf16.msra.mxu0 0
  %1362 = vmatprep.subr.bf16.mxu0 0
  %1363 = vmatpush1.bf16.msra.mxu0 0
  %1364 = vmatprep.subr.bf16.mxu0 0
  %1365 = vmatpush1.bf16.msra.mxu0 0
  %1366 = vmatprep.subr.bf16.mxu0 0
  %1367 = vmatpush1.bf16.msra.mxu0 0
  %1368 = vmatprep.subr.bf16.mxu0 0
  %1369 = vmatpush1.bf16.msra.mxu0 0
  %1370 = vmatprep.subr.bf16.mxu0 0
  %1371 = vmatpush1.bf16.msra.mxu0 0
  %1372 = vmatprep.subr.bf16.mxu0 0
  %1373 = vmatpush1.bf16.msra.mxu0 0
  %1374 = vmatprep.subr.bf16.mxu0 0
  %1375 = vmatpush1.bf16.msra.mxu0 0
  %1376 = vmatprep.subr.bf16.mxu0 0
  %1377 = vmatpush1.bf16.msra.mxu0 0
  %1378 = vmatprep.subr.bf16.mxu0 0
  %1379 = vmatpush1.bf16.msra.mxu0 0
  %1380 = vmatprep.subr.bf16.mxu0 0
  %1381 = vmatpush1.bf16.msra.mxu0 0
  %1382 = vmatprep.mubr.bf16.mxu0 0
  %1383 = vmatmul.mubr.bf16.gmra.mrb[0].mxu0 %v1348
  %v1384 = vpop.f32.mrb[0].mxu0
  %v1385 = vadd.f32 %v1319, %v1384
  %v1386 = vpop.f32.mrb[0].mxu0
  %v1387 = vpop.f32.mrb[0].mxu0
  %v1388 = vpop.f32.mrb[0].mxu0
  %1389 = vdwg.mxu0
  %v1390 = vsel %vm886, %v1385, %v1307
  %1391 = vst [vmem:[%s4] sm:$0x3] %v1390
  // Predicated region
  $region18: #{video_frame_forward.1} parent=0 // pred_check
    _
  $region19: #{video_frame_forward.1} parent=0 // pred_check_branch
    %1393 = sbr.rel (0) target = $region21
  $region20: #{video_frame_forward.1} parent=0 // pred_region
    _
  $region21: #{video_frame_forward.1} parent=0 // pred_fallthru
    _
  // Predicated region
  $region22: #{video_frame_forward.1} parent=0 // pred_check
    _
  $region23: #{video_frame_forward.1} parent=0 // pred_check_branch
    %1395 = sbr.rel (0) target = $region25
  $region24: #{video_frame_forward.1} parent=0 // pred_region
    _
  $region25: #{video_frame_forward.1} parent=0 // pred_fallthru
    _

</llo_original>
